<compile_context>
chip_gen: v7x
topology: tpu7x:2x2x1
jax: 0.10.0
libtpu: 0.0.40
codegen_flags: <defaults>
</compile_context>

<pallas_src>
import functools

import jax
import jax.numpy as jnp
from jax import lax
from jax.experimental import pallas as pl
from jax.experimental.pallas import tpu as pltpu

NEG_INF = -1e9
LEAKY_SLOPE = 0.2               # PyG GATConv default negative_slope


# --------------------------------------------------------------------------------------
# Per-generation configuration
# --------------------------------------------------------------------------------------
def _tpu_config():
    """(tile_n, vmem_limit_bytes, exp_dtype) chosen per TPU generation."""
    try:
        kind = jax.devices()[0].device_kind.lower()
    except Exception:
        kind = ""
    big_vmem = ("v5" in kind) or ("v6" in kind)                 # 128 MiB VMEM parts
    bf16_eup = ("v6" in kind) or ("v7" in kind) or ("tpu7" in kind)
    tile = 256 if big_vmem else 128                              # v7x/unknown: 128
    vmem = (96 if big_vmem else 48) * 1024 * 1024
    exp_dtype = jnp.bfloat16 if bf16_eup else jnp.float32       # no bf16 EUP on v5e
    return tile, vmem, exp_dtype


# --------------------------------------------------------------------------------------
# Kernels
# --------------------------------------------------------------------------------------
def _proj_kernel(x_ref, w_ref, xp_ref, asrc_ref, adst_ref, *, heads, f_out):
    """Row tile of the fused projection.

    x_ref   : [T, Fin]            (any float dtype; cast to bf16)
    w_ref   : [Fin, Cpad]  bf16   columns = [ W | W@a_src | W@a_dst | zero-pad ]
    xp_ref  : [H, T, F]    bf16   head-major projected features
    asrc_ref: [T, H]       f32    a_src . xp per head
    adst_ref: [T, H]       f32    a_dst . xp per head
    """
    x = x_ref[...].astype(jnp.bfloat16)
    slab = jnp.dot(x, w_ref[...], preferred_element_type=jnp.float32)   # [T, Cpad]
    hf = heads * f_out
    for h in range(heads):                                   # static lane slices
        xp_ref[h] = slab[:, h * f_out:(h + 1) * f_out].astype(jnp.bfloat16)
    asrc_ref[...] = slab[:, hf:hf + heads]
    adst_ref[...] = slab[:, hf + heads:hf + 2 * heads]


def _head_attention(h, neg, adst_ref, asrc_ref, xp_ref, exp_dtype):
    """Attention output [T, F] (f32) for head h on one destination-row tile."""
    e = adst_ref[h] + asrc_ref[h]                            # [T,1]+[1,Np] -> [T,Np]
    e = jnp.maximum(e, LEAKY_SLOPE * e)                      # LeakyReLU (2 VALU ops)
    e = e + neg                                              # additive adjacency mask
    e = e - jnp.max(e, axis=1, keepdims=True)
    p = jnp.exp(e.astype(exp_dtype))                         # masked entries -> exactly 0
    inv = pl.reciprocal(jnp.sum(p.astype(jnp.float32), axis=1, keepdims=True),
                        approx=True)                         # f32 row-sum, EUP recip
    o = jnp.dot(p.astype(jnp.bfloat16), xp_ref[h],
                preferred_element_type=jnp.float32)          # [T, F]
    return o * inv                                           # deferred normalization


def _attn_concat_kernel(adj_ref, adst_ref, asrc_ref, xp_ref, bias_ref, out_ref, acc_ref,
                        *, heads, apply_elu, exp_dtype):
    """Concat-heads GAT attention for one destination-row tile.

    adj_ref : [T, Np]     int8   adjacency rows (edge j -> i, self-loops included)
    adst_ref: [H, T, 1]   f32
    asrc_ref: [H, 1, Np]  f32
    xp_ref  : [H, Np, F]  bf16
    bias_ref: [H, 1, F]   f32
    out_ref : [T, H*F]    bf16   (single lane-dense slab)
    acc_ref : [H, T, F]   f32    scratch
    """
    neg = jnp.where(adj_ref[...] > 0, 0.0, NEG_INF)          # [T, Np] f32, once per tile

    @pl.loop(0, heads)      # non-unrolled: one [T, Np] temporary live at a time
    def _(h):
        res = _head_attention(h, neg, adst_ref, asrc_ref, xp_ref, exp_dtype) + bias_ref[h]
        if apply_elu:
            res = jnp.where(res > 0, res, jnp.exp(res) - 1.0)
        acc_ref[h] = res

    # Single lane-dense store of the whole tile (no per-head HBM writes, no XLA transpose).
    out_ref[...] = jnp.concatenate([acc_ref[h] for h in range(heads)],
                                   axis=1).astype(out_ref.dtype)


def _attn_mean_pool_kernel(adj_ref, adst_ref, asrc_ref, xp_ref, bias_ref, pool_ref,
                           out_ref, *, heads, exp_dtype):
    """Mean-heads GAT attention + fused global_add_pool for one destination-row tile.

    pool_ref: [G, T] f32 one-hot pooling columns for this tile (padded nodes are zero)
    out_ref : [G, F] f32 accumulated across the grid (axis marked "arbitrary")
    """
    tile = adj_ref.shape[0]
    f_out = xp_ref.shape[2]
    neg = jnp.where(adj_ref[...] > 0, 0.0, NEG_INF)

    acc = lax.fori_loop(
        0, heads,
        lambda h, a: a + _head_attention(h, neg, adst_ref, asrc_ref, xp_ref, exp_dtype),
        jnp.zeros((tile, f_out), jnp.float32))
    res = acc * (1.0 / heads) + bias_ref[...]                # [T, F]

    @pl.when(pl.program_id(0) == 0)
    def _():
        out_ref[...] = jnp.zeros_like(out_ref)

    out_ref[...] += jnp.dot(pool_ref[...], res, preferred_element_type=jnp.float32)


# --------------------------------------------------------------------------------------
# Wrappers
# --------------------------------------------------------------------------------------
def _combined_weight(w, a_src, a_dst):
    """[Fin, Cpad] bf16 RHS = concat(W, W@a_src, W@a_dst), lane-padded to 128."""
    f_in = w.shape[0]
    heads, f_out = a_src.shape
    w3 = w.reshape(f_in, heads, f_out)
    wa_src = jnp.einsum("ihf,hf->ih", w3, a_src)             # [Fin, H]
    wa_dst = jnp.einsum("ihf,hf->ih", w3, a_dst)             # [Fin, H]
    comb = jnp.concatenate([w, wa_src, wa_dst], axis=1)      # [Fin, H*F + 2H]
    c = comb.shape[1]
    c_pad = ((c + 127) // 128) * 128
    if c_pad != c:
        comb = jnp.pad(comb, ((0, 0), (0, c_pad - c)))
    return comb.astype(jnp.bfloat16)


def _project(x, w_comb, *, heads, f_out, tile, vmem):
    """Fused projection pallas_call -> (xp [H,Np,F] bf16, asrc [Np,H], adst [Np,H])."""
    np_, f_in = x.shape
    c_pad = w_comb.shape[1]
    kern = functools.partial(_proj_kernel, heads=heads, f_out=f_out)
    return pl.pallas_call(
        kern,
        out_shape=(jax.ShapeDtypeStruct((heads, np_, f_out), jnp.bfloat16),
                   jax.ShapeDtypeStruct((np_, heads), jnp.float32),
                   jax.ShapeDtypeStruct((np_, heads), jnp.float32)),
        grid=(np_ // tile,),
        in_specs=[pl.BlockSpec((tile, f_in), lambda i: (i, 0)),
                  pl.BlockSpec((f_in, c_pad), lambda i: (0, 0))],
        out_specs=(pl.BlockSpec((heads, tile, f_out), lambda i: (0, i, 0)),
                   pl.BlockSpec((tile, heads), lambda i: (i, 0)),
                   pl.BlockSpec((tile, heads), lambda i: (i, 0))),
        compiler_params=pltpu.CompilerParams(dimension_semantics=("parallel",),
                                             vmem_limit_bytes=vmem),
    )(x, w_comb)


def _gat_layer_concat(x, adj, w_comb, bias, *, heads, f_out, apply_elu,
                      tile, vmem, exp_dtype):
    """GATConv(concat=True) -> [Np, H*F] bf16."""
    np_ = x.shape[0]
    xp, asrc, adst = _project(x, w_comb, heads=heads, f_out=f_out, tile=tile, vmem=vmem)

    # Tiny (Np x H) layout plumbing in XLA; the large xp tensor is already head-major.
    asrc3 = asrc.T.reshape(heads, 1, np_)
    adst3 = adst.T.reshape(heads, np_, 1)
    bias3 = bias.reshape(heads, 1, f_out).astype(jnp.float32)

    kern = functools.partial(_attn_concat_kernel, heads=heads, apply_elu=apply_elu,
                             exp_dtype=exp_dtype)
    cost = pl.CostEstimate(
        flops=2 * heads * np_ * np_ * f_out + 8 * heads * np_ * np_,
        transcendentals=heads * np_ * np_,
        bytes_accessed=np_ * np_ + 2 * heads * np_ * f_out + 8 * heads * np_
                       + 2 * np_ * heads * f_out)

    return pl.pallas_call(
        kern,
        out_shape=jax.ShapeDtypeStruct((np_, heads * f_out), jnp.bfloat16),
        grid=(np_ // tile,),
        in_specs=[pl.BlockSpec((tile, np_), lambda i: (i, 0)),            # adj int8 rows
                  pl.BlockSpec((heads, tile, 1), lambda i: (0, i, 0)),    # adst tile
                  pl.BlockSpec((heads, 1, np_), lambda i: (0, 0, 0)),     # asrc (all)
                  pl.BlockSpec((heads, np_, f_out), lambda i: (0, 0, 0)), # xp (all)
                  pl.BlockSpec((heads, 1, f_out), lambda i: (0, 0, 0))],  # bias
        out_specs=pl.BlockSpec((tile, heads * f_out), lambda i: (i, 0)),
        scratch_shapes=[pltpu.VMEM((heads, tile, f_out), jnp.float32)],
        compiler_params=pltpu.CompilerParams(dimension_semantics=("parallel",),
                                             vmem_limit_bytes=vmem),
        cost_estimate=cost,
    )(adj, adst3, asrc3, xp, bias3)


def _gat_layer_mean_pool(x, adj, pool, w_comb, bias, *, heads, f_out,
                         tile, vmem, exp_dtype):
    """GATConv(concat=False) fused with global_add_pool -> [G, F] f32."""
    np_ = x.shape[0]
    g = pool.shape[0]
    xp, asrc, adst = _project(x, w_comb, heads=heads, f_out=f_out, tile=tile, vmem=vmem)

    asrc3 = asrc.T.reshape(heads, 1, np_)
    adst3 = adst.T.reshape(heads, np_, 1)
    bias2 = bias.reshape(1, f_out).astype(jnp.float32)

    kern = functools.partial(_attn_mean_pool_kernel, heads=heads, exp_dtype=exp_dtype)
    return pl.pallas_call(
        kern,
        out_shape=jax.ShapeDtypeStruct((g, f_out), jnp.float32),
        grid=(np_ // tile,),
        in_specs=[pl.BlockSpec((tile, np_), lambda i: (i, 0)),
                  pl.BlockSpec((heads, tile, 1), lambda i: (0, i, 0)),
                  pl.BlockSpec((heads, 1, np_), lambda i: (0, 0, 0)),
                  pl.BlockSpec((heads, np_, f_out), lambda i: (0, 0, 0)),
                  pl.BlockSpec((1, f_out), lambda i: (0, 0)),
                  pl.BlockSpec((g, tile), lambda i: (0, i))],             # pool columns
        out_specs=pl.BlockSpec((g, f_out), lambda i: (0, 0)),             # accumulator
        compiler_params=pltpu.CompilerParams(dimension_semantics=("arbitrary",),
                                             vmem_limit_bytes=vmem),
    )(adj, adst3, asrc3, xp, bias2, pool)


def gat_forward(x, adj, pool, params, *, heads1, hc, out_channels):
    """GAT.forward: conv1 -> ELU -> dropout(eval) -> conv2 -> global_add_pool."""
    tile, vmem, exp_dtype = _tpu_config()

    if adj.dtype != jnp.int8:
        adj = (adj > 0).astype(jnp.int8)

    n = x.shape[0]
    np_ = -(-n // tile) * tile
    pad = np_ - n
    if pad:
        x = jnp.pad(x, ((0, pad), (0, 0)))
        adj = jnp.pad(adj, ((0, pad), (0, pad)))
        # self-loops on padded rows keep every softmax row finite; padded nodes are
        # excluded from the pool matrix so they never reach real outputs.
        idx = jnp.arange(n, np_)
        adj = adj.at[idx, idx].set(1)
        pool = jnp.pad(pool, ((0, 0), (0, pad)))

    w1c = _combined_weight(params["w1"], params["a1_src"], params["a1_dst"])
    w2c = _combined_weight(params["w2"], params["a2_src"], params["a2_dst"])

    h1 = _gat_layer_concat(x, adj, w1c, params["b1"], heads=heads1, f_out=hc,
                           apply_elu=True, tile=tile, vmem=vmem, exp_dtype=exp_dtype)
    # F.dropout(x, training=self.training): eval-mode identity.
    # TODO(synk): training-mode dropout (pltpu.prng_* masking) not implemented.
    return _gat_layer_mean_pool(h1, adj, pool, w2c, params["b2"], heads=1,
                                f_out=out_channels, tile=tile, vmem=vmem,
                                exp_dtype=exp_dtype)


# --------------------------------------------------------------------------------------
# Pure-JAX reference (f32, unpadded) for a sanity check
# --------------------------------------------------------------------------------------
def _reference(x, adj, pool, p, *, heads, hc, out_c):
    adjf = (adj > 0)

    def layer(h, w, a_src, a_dst, b, nh, f, concat):
        xp = h @ w
        xp3 = xp.reshape(-1, nh, f)
        asrc = jnp.einsum("nhf,hf->nh", xp3, a_src)
        adst = jnp.einsum("nhf,hf->nh", xp3, a_dst)
        e = adst[:, None, :] + asrc[None, :, :]            # [i, j, h]
        e = jnp.where(e > 0, e, LEAKY_SLOPE * e)
        e = jnp.where(adjf[:, :, None], e, NEG_INF)
        e = e - e.max(axis=1, keepdims=True)
        pr = jnp.exp(e) * adjf[:, :, None]
        attn = pr / pr.sum(axis=1, keepdims=True)
        o = jnp.einsum("ijh,jhf->ihf", attn, xp3)
        if concat:
            return o.reshape(-1, nh * f) + b.reshape(1, -1)
        return o.mean(axis=1) + b.reshape(1, -1)

    h1 = layer(x, p["w1"], p["a1_src"], p["a1_dst"], p["b1"], heads, hc, True)
    h1 = jnp.where(h1 > 0, h1, jnp.exp(h1) - 1.0)
    h2 = layer(h1, p["w2"], p["a2_src"], p["a2_dst"], p["b2"], 1, out_c, False)
    return pool @ h2


# --------------------------------------------------------------------------------------
if __name__ == "__main__":
    # Small shapes consistent with GAT(in_channels, h_channels, out_channels)
    N, F_IN, HC, HEADS, OUT, G = 16, 8, 8, 8, 16, 2

    key = jax.random.PRNGKey(0)
    ks = jax.random.split(key, 9)

    # Deterministic graph: two graphs of 8 nodes each, bidirectional ring edges.
    nodes_per_graph = N // G
    src, dst = [], []
    for gidx in range(G):
        base = gidx * nodes_per_graph
        for i in range(nodes_per_graph):
            a = base + i
            b = base + (i + 1) % nodes_per_graph
            src += [a, b]
            dst += [b, a]
    edge_index = jnp.array([src, dst], dtype=jnp.int32)
    batch = jnp.array([gidx for gidx in range(G) for _ in range(nodes_per_graph)],
                      dtype=jnp.int32)

    # Dense int8 adjacency mask adj[i, j] = 1 iff edge j -> i, plus self-loops.
    adj = jnp.zeros((N, N), jnp.int8)
    adj = adj.at[edge_index[1], edge_index[0]].set(1)
    adj = jnp.maximum(adj, jnp.eye(N, dtype=jnp.int8))

    # global_add_pool one-hot matrix.
    pool = (batch[None, :] == jnp.arange(G)[:, None]).astype(jnp.float32)   # [G, N]

    # Deterministic parameters (shapes match PyG GATConv parameters).
    params = dict(
        w1=jax.random.normal(ks[0], (F_IN, HEADS * HC), jnp.float32) * 0.2,
        a1_src=jax.random.normal(ks[1], (HEADS, HC), jnp.float32) * 0.2,
        a1_dst=jax.random.normal(ks[2], (HEADS, HC), jnp.float32) * 0.2,
        b1=jax.random.normal(ks[3], (HEADS * HC,), jnp.float32) * 0.1,
        w2=jax.random.normal(ks[4], (HEADS * HC, OUT), jnp.float32) * 0.2,
        a2_src=jax.random.normal(ks[5], (1, OUT), jnp.float32) * 0.2,
        a2_dst=jax.random.normal(ks[6], (1, OUT), jnp.float32) * 0.2,
        b2=jax.random.normal(ks[7], (OUT,), jnp.float32) * 0.1,
    )
    x = jax.random.normal(ks[8], (N, F_IN), jnp.float32)

    out = gat_forward(x, adj, pool, params, heads1=HEADS, hc=HC, out_channels=OUT)
    jax.block_until_ready(out)

    ref = _reference(x, adj, pool, params, heads=HEADS, hc=HC, out_c=OUT)
    assert out.shape == (G, OUT)
    assert bool(jnp.all(jnp.isfinite(out)))
    assert bool(jnp.allclose(out, ref, rtol=1e-1, atol=1e-1))
    print("KERNEL_OK")
</pallas_src>

<mosaic_0001>
module attributes {stable_mosaic.version = 11 : i64} {
  func.func @_proj_kernel(%arg0: i32, %arg1: memref<128x8xf32, #tpu.memory_space<vmem>>, %arg2: memref<8x128xbf16, #tpu.memory_space<vmem>>, %arg3: memref<8x128x8xbf16, #tpu.memory_space<vmem>>, %arg4: memref<128x8xf32, #tpu.memory_space<vmem>>, %arg5: memref<128x8xf32, #tpu.memory_space<vmem>>) attributes {dimension_semantics = [#tpu.dimension_semantics<parallel>], iteration_bounds = array<i64: 1>, scalar_prefetch = 0 : i64, scratch_operands = 0 : i64, tpu.core_type = #tpu.core_type<tc>, window_params = [{transform_indices = @transform_0, window_bounds = array<i64: 128, 8>}, {pipeline_mode = #tpu.pipeline_mode<synchronous>, transform_indices = @transform_1, window_bounds = array<i64: 8, 128>}, {transform_indices = @transform_2, window_bounds = array<i64: 8, 128, 8>}, {transform_indices = @transform_3, window_bounds = array<i64: 128, 8>}, {transform_indices = @transform_4, window_bounds = array<i64: 128, 8>}]} {
    %c0 = arith.constant 0 : index
    %c0_0 = arith.constant 0 : index
    %0 = vector.load %arg1[%c0, %c0_0] : memref<128x8xf32, #tpu.memory_space<vmem>>, vector<128x8xf32>
    %1 = arith.truncf %0 : vector<128x8xf32> to vector<128x8xbf16>
    %c0_1 = arith.constant 0 : index
    %c0_2 = arith.constant 0 : index
    %2 = vector.load %arg2[%c0_1, %c0_2] : memref<8x128xbf16, #tpu.memory_space<vmem>>, vector<8x128xbf16>
    %cst = arith.constant dense<0.000000e+00> : vector<128x128xf32>
    %3 = tpu.matmul %1, %2, %cst {dimension_numbers = #tpu.dot_dimension_numbers<[1], [0], [0], [1], [0, 0, 1, 1], [], []>} : vector<128x8xbf16>, vector<8x128xbf16>, vector<128x128xf32> -> vector<128x128xf32>
    %4 = vector.extract_strided_slice %3 {offsets = [0, 0], sizes = [128, 8], strides = [1, 1]} : vector<128x128xf32> to vector<128x8xf32>
    %5 = arith.truncf %4 : vector<128x8xf32> to vector<128x8xbf16>
    %c0_3 = arith.constant 0 : index
    %c0_4 = arith.constant 0 : index
    %c0_5 = arith.constant 0 : index
    %6 = vector.load %arg3[%c0_3, %c0_4, %c0_5] : memref<8x128x8xbf16, #tpu.memory_space<vmem>>, vector<1x128x8xbf16>
    %7 = vector.shape_cast %6 : vector<1x128x8xbf16> to vector<128x8xbf16>
    %8 = vector.shape_cast %5 : vector<128x8xbf16> to vector<1x128x8xbf16>
    tpu.vector_store %arg3[%c0_3, %c0_4, %c0_5], %8 {strides = array<i32>} : memref<8x128x8xbf16, #tpu.memory_space<vmem>>, vector<1x128x8xbf16>,
    %9 = vector.extract_strided_slice %3 {offsets = [0, 8], sizes = [128, 8], strides = [1, 1]} : vector<128x128xf32> to vector<128x8xf32>
    %10 = arith.truncf %9 : vector<128x8xf32> to vector<128x8xbf16>
    %c1 = arith.constant 1 : index
    %c0_6 = arith.constant 0 : index
    %c0_7 = arith.constant 0 : index
    %11 = vector.load %arg3[%c1, %c0_6, %c0_7] : memref<8x128x8xbf16, #tpu.memory_space<vmem>>, vector<1x128x8xbf16>
    %12 = vector.shape_cast %11 : vector<1x128x8xbf16> to vector<128x8xbf16>
    %13 = vector.shape_cast %10 : vector<128x8xbf16> to vector<1x128x8xbf16>
    tpu.vector_store %arg3[%c1, %c0_6, %c0_7], %13 {strides = array<i32>} : memref<8x128x8xbf16, #tpu.memory_space<vmem>>, vector<1x128x8xbf16>,
    %14 = vector.extract_strided_slice %3 {offsets = [0, 16], sizes = [128, 8], strides = [1, 1]} : vector<128x128xf32> to vector<128x8xf32>
    %15 = arith.truncf %14 : vector<128x8xf32> to vector<128x8xbf16>
    %c2 = arith.constant 2 : index
    %c0_8 = arith.constant 0 : index
    %c0_9 = arith.constant 0 : index
    %16 = vector.load %arg3[%c2, %c0_8, %c0_9] : memref<8x128x8xbf16, #tpu.memory_space<vmem>>, vector<1x128x8xbf16>
    %17 = vector.shape_cast %16 : vector<1x128x8xbf16> to vector<128x8xbf16>
    %18 = vector.shape_cast %15 : vector<128x8xbf16> to vector<1x128x8xbf16>
    tpu.vector_store %arg3[%c2, %c0_8, %c0_9], %18 {strides = array<i32>} : memref<8x128x8xbf16, #tpu.memory_space<vmem>>, vector<1x128x8xbf16>,
    %19 = vector.extract_strided_slice %3 {offsets = [0, 24], sizes = [128, 8], strides = [1, 1]} : vector<128x128xf32> to vector<128x8xf32>
    %20 = arith.truncf %19 : vector<128x8xf32> to vector<128x8xbf16>
    %c3 = arith.constant 3 : index
    %c0_10 = arith.constant 0 : index
    %c0_11 = arith.constant 0 : index
    %21 = vector.load %arg3[%c3, %c0_10, %c0_11] : memref<8x128x8xbf16, #tpu.memory_space<vmem>>, vector<1x128x8xbf16>
    %22 = vector.shape_cast %21 : vector<1x128x8xbf16> to vector<128x8xbf16>
    %23 = vector.shape_cast %20 : vector<128x8xbf16> to vector<1x128x8xbf16>
    tpu.vector_store %arg3[%c3, %c0_10, %c0_11], %23 {strides = array<i32>} : memref<8x128x8xbf16, #tpu.memory_space<vmem>>, vector<1x128x8xbf16>,
    %24 = vector.extract_strided_slice %3 {offsets = [0, 32], sizes = [128, 8], strides = [1, 1]} : vector<128x128xf32> to vector<128x8xf32>
    %25 = arith.truncf %24 : vector<128x8xf32> to vector<128x8xbf16>
    %c4 = arith.constant 4 : index
    %c0_12 = arith.constant 0 : index
    %c0_13 = arith.constant 0 : index
    %26 = vector.load %arg3[%c4, %c0_12, %c0_13] : memref<8x128x8xbf16, #tpu.memory_space<vmem>>, vector<1x128x8xbf16>
    %27 = vector.shape_cast %26 : vector<1x128x8xbf16> to vector<128x8xbf16>
    %28 = vector.shape_cast %25 : vector<128x8xbf16> to vector<1x128x8xbf16>
    tpu.vector_store %arg3[%c4, %c0_12, %c0_13], %28 {strides = array<i32>} : memref<8x128x8xbf16, #tpu.memory_space<vmem>>, vector<1x128x8xbf16>,
    %29 = vector.extract_strided_slice %3 {offsets = [0, 40], sizes = [128, 8], strides = [1, 1]} : vector<128x128xf32> to vector<128x8xf32>
    %30 = arith.truncf %29 : vector<128x8xf32> to vector<128x8xbf16>
    %c5 = arith.constant 5 : index
    %c0_14 = arith.constant 0 : index
    %c0_15 = arith.constant 0 : index
    %31 = vector.load %arg3[%c5, %c0_14, %c0_15] : memref<8x128x8xbf16, #tpu.memory_space<vmem>>, vector<1x128x8xbf16>
    %32 = vector.shape_cast %31 : vector<1x128x8xbf16> to vector<128x8xbf16>
    %33 = vector.shape_cast %30 : vector<128x8xbf16> to vector<1x128x8xbf16>
    tpu.vector_store %arg3[%c5, %c0_14, %c0_15], %33 {strides = array<i32>} : memref<8x128x8xbf16, #tpu.memory_space<vmem>>, vector<1x128x8xbf16>,
    %34 = vector.extract_strided_slice %3 {offsets = [0, 48], sizes = [128, 8], strides = [1, 1]} : vector<128x128xf32> to vector<128x8xf32>
    %35 = arith.truncf %34 : vector<128x8xf32> to vector<128x8xbf16>
    %c6 = arith.constant 6 : index
    %c0_16 = arith.constant 0 : index
    %c0_17 = arith.constant 0 : index
    %36 = vector.load %arg3[%c6, %c0_16, %c0_17] : memref<8x128x8xbf16, #tpu.memory_space<vmem>>, vector<1x128x8xbf16>
    %37 = vector.shape_cast %36 : vector<1x128x8xbf16> to vector<128x8xbf16>
    %38 = vector.shape_cast %35 : vector<128x8xbf16> to vector<1x128x8xbf16>
    tpu.vector_store %arg3[%c6, %c0_16, %c0_17], %38 {strides = array<i32>} : memref<8x128x8xbf16, #tpu.memory_space<vmem>>, vector<1x128x8xbf16>,
    %39 = vector.extract_strided_slice %3 {offsets = [0, 56], sizes = [128, 8], strides = [1, 1]} : vector<128x128xf32> to vector<128x8xf32>
    %40 = arith.truncf %39 : vector<128x8xf32> to vector<128x8xbf16>
    %c7 = arith.constant 7 : index
    %c0_18 = arith.constant 0 : index
    %c0_19 = arith.constant 0 : index
    %41 = vector.load %arg3[%c7, %c0_18, %c0_19] : memref<8x128x8xbf16, #tpu.memory_space<vmem>>, vector<1x128x8xbf16>
    %42 = vector.shape_cast %41 : vector<1x128x8xbf16> to vector<128x8xbf16>
    %43 = vector.shape_cast %40 : vector<128x8xbf16> to vector<1x128x8xbf16>
    tpu.vector_store %arg3[%c7, %c0_18, %c0_19], %43 {strides = array<i32>} : memref<8x128x8xbf16, #tpu.memory_space<vmem>>, vector<1x128x8xbf16>,
    %44 = vector.extract_strided_slice %3 {offsets = [0, 64], sizes = [128, 8], strides = [1, 1]} : vector<128x128xf32> to vector<128x8xf32>
    %c0_20 = arith.constant 0 : index
    %c0_21 = arith.constant 0 : index
    %45 = vector.load %arg4[%c0_20, %c0_21] : memref<128x8xf32, #tpu.memory_space<vmem>>, vector<128x8xf32>
    tpu.vector_store %arg4[%c0_20, %c0_21], %44 {strides = array<i32>} : memref<128x8xf32, #tpu.memory_space<vmem>>, vector<128x8xf32>,
    %46 = vector.extract_strided_slice %3 {offsets = [0, 72], sizes = [128, 8], strides = [1, 1]} : vector<128x128xf32> to vector<128x8xf32>
    %c0_22 = arith.constant 0 : index
    %c0_23 = arith.constant 0 : index
    %47 = vector.load %arg5[%c0_22, %c0_23] : memref<128x8xf32, #tpu.memory_space<vmem>>, vector<128x8xf32>
    tpu.vector_store %arg5[%c0_22, %c0_23], %46 {strides = array<i32>} : memref<128x8xf32, #tpu.memory_space<vmem>>, vector<128x8xf32>,
    return
  }
  func.func @transform_0(%arg0: i32) -> (i32, i32) {
    %c0_i32 = arith.constant 0 : i32
    %c0_i32_0 = arith.constant 0 : i32
    return %arg0, %c0_i32 : i32, i32
  }
  func.func @transform_1(%arg0: i32) -> (i32, i32) {
    %c0_i32 = arith.constant 0 : i32
    %c0_i32_0 = arith.constant 0 : i32
    %c0_i32_1 = arith.constant 0 : i32
    return %c0_i32, %c0_i32_0 : i32, i32
  }
  func.func @transform_2(%arg0: i32) -> (i32, i32, i32) {
    %c0_i32 = arith.constant 0 : i32
    %c0_i32_0 = arith.constant 0 : i32
    %c0_i32_1 = arith.constant 0 : i32
    return %c0_i32, %arg0, %c0_i32_0 : i32, i32, i32
  }
  func.func @transform_3(%arg0: i32) -> (i32, i32) {
    %c0_i32 = arith.constant 0 : i32
    %c0_i32_0 = arith.constant 0 : i32
    return %arg0, %c0_i32 : i32, i32
  }
  func.func @transform_4(%arg0: i32) -> (i32, i32) {
    %c0_i32 = arith.constant 0 : i32
    %c0_i32_0 = arith.constant 0 : i32
    return %arg0, %c0_i32 : i32, i32
  }
}

</mosaic_0001>

<llo_original>
// kernel: tpu_custom_call.1
$region0: #{tpu_custom_call.1}
  #allocation0 [shape = 'u32[]', space=smem, size = 0x4, offset = 0x4, fixed_abs, tag = 'smem constant byte address 0x4 - core index']
  #allocation1 [shape = 'u32[144,128]{1,0:T(1,128)}', space=vmem, size = 0x12000, scoped, tag = 'internal scratch']
  %s0 = inlined_call_operand.vmem [shape: f32[128,8], index: 0, kind: input, shape index: {}]
  %s1 = inlined_call_operand.vmem [shape: bf16[8,128], index: 1, kind: input, shape index: {}]
  %s2 = inlined_call_operand.vmem [shape: bf16[8,128,8], index: 2, kind: output, shape index: {0}]
  %s3 = inlined_call_operand.vmem [shape: f32[128,8], index: 3, kind: output, shape index: {1}]
  %s4 = inlined_call_operand.vmem [shape: f32[128,8], index: 4, kind: output, shape index: {2}]
  %5 = xla_tuple %s2, %s3, %s4
  %s6 = sld [smem:[#allocation0]]
  $region34: #{tpu_custom_call.1} parent=0
    _
  %s8 = ssub.s32 1, %s6
  %s9 = scalar_select 0, %s8, %s6
  // Predicated region
  $region2: #{tpu_custom_call.1} parent=0 // pred_check
    _
  $region3: #{tpu_custom_call.1} parent=0 // pred_check_branch
    %11 = sbr.rel (0) target = $region5
  $region4: #{tpu_custom_call.1} parent=0 // pred_region
    _
  $region5: #{tpu_custom_call.1} parent=0 // pred_fallthru
    _
  // Predicated region
  $region6: #{tpu_custom_call.1} parent=0 // pred_check
    _
  $region7: #{tpu_custom_call.1} parent=0 // pred_check_branch
    %13 = sbr.rel (0) target = $region9
  $region8: #{tpu_custom_call.1} parent=0 // pred_region
    _
  $region9: #{tpu_custom_call.1} parent=0 // pred_fallthru
    _
  %v15 = vld [vmem:[%s0] sm:$0xff]
  %v16 = vld [vmem:[%s0 + $0x8] sm:$0xff]
  %v17 = vld [vmem:[%s0 + $0x10] sm:$0xff]
  %v18 = vld [vmem:[%s0 + $0x18] sm:$0xff]
  %v19 = vld [vmem:[%s0 + $0x20] sm:$0xff]
  %v20 = vld [vmem:[%s0 + $0x28] sm:$0xff]
  %v21 = vld [vmem:[%s0 + $0x30] sm:$0xff]
  %v22 = vld [vmem:[%s0 + $0x38] sm:$0xff]
  %v23 = vld [vmem:[%s0 + $0x40] sm:$0xff]
  %v24 = vld [vmem:[%s0 + $0x48] sm:$0xff]
  %v25 = vld [vmem:[%s0 + $0x50] sm:$0xff]
  %v26 = vld [vmem:[%s0 + $0x58] sm:$0xff]
  %v27 = vld [vmem:[%s0 + $0x60] sm:$0xff]
  %v28 = vld [vmem:[%s0 + $0x68] sm:$0xff]
  %v29 = vld [vmem:[%s0 + $0x70] sm:$0xff]
  %v30 = vld [vmem:[%s0 + $0x78] sm:$0xff]
  %v31 = vpack.c.bf16 %v16, %v15
  %v32 = vpack.c.bf16 %v18, %v17
  %v33 = vpack.c.bf16 %v20, %v19
  %v34 = vpack.c.bf16 %v22, %v21
  %v35 = vpack.c.bf16 %v24, %v23
  %v36 = vpack.c.bf16 %v26, %v25
  %v37 = vpack.c.bf16 %v28, %v27
  %v38 = vpack.c.bf16 %v30, %v29
  %v39 = vld [vmem:[%s1] sm:$0xf]
  %vm40 = vcmask 64512
  %v42 = vsel %vm40, %v31, 0
  %v45 = vsel %vm40, %v32, 0
  %v48 = vsel %vm40, %v33, 0
  %v51 = vsel %vm40, %v34, 0
  %v54 = vsel %vm40, %v35, 0
  %v57 = vsel %vm40, %v36, 0
  %v60 = vsel %vm40, %v37, 0
  %v63 = vsel %vm40, %v38, 0
  %vm65 = vcmask 1043456
  %v67 = vsel %vm65, %v39, 0
  %69 = vmatprep.subr.bf16.mxu0 0
  %70 = vmatpush1.bf16.msra.mxu0 %v67
  %71 = vmatprep.subr.bf16.mxu0 0
  %72 = vmatpush1.bf16.msra.mxu0 0
  %73 = vmatprep.subr.bf16.mxu0 0
  %74 = vmatpush1.bf16.msra.mxu0 0
  %75 = vmatprep.subr.bf16.mxu0 0
  %76 = vmatpush1.bf16.msra.mxu0 0
  %77 = vmatprep.subr.bf16.mxu0 0
  %78 = vmatpush1.bf16.msra.mxu0 0
  %79 = vmatprep.subr.bf16.mxu0 0
  %80 = vmatpush1.bf16.msra.mxu0 0
  %81 = vmatprep.subr.bf16.mxu0 0
  %82 = vmatpush1.bf16.msra.mxu0 0
  %83 = vmatprep.subr.bf16.mxu0 0
  %84 = vmatpush1.bf16.msra.mxu0 0
  %85 = vmatprep.subr.bf16.mxu0 0
  %86 = vmatpush1.bf16.msra.mxu0 0
  %87 = vmatprep.subr.bf16.mxu0 0
  %88 = vmatpush1.bf16.msra.mxu0 0
  %89 = vmatprep.subr.bf16.mxu0 0
  %90 = vmatpush1.bf16.msra.mxu0 0
  %91 = vmatprep.subr.bf16.mxu0 0
  %92 = vmatpush1.bf16.msra.mxu0 0
  %93 = vmatprep.subr.bf16.mxu0 0
  %94 = vmatpush1.bf16.msra.mxu0 0
  %95 = vmatprep.subr.bf16.mxu0 0
  %96 = vmatpush1.bf16.msra.mxu0 0
  %97 = vmatprep.subr.bf16.mxu0 0
  %98 = vmatpush1.bf16.msra.mxu0 0
  %99 = vmatprep.subr.bf16.mxu0 0
  %100 = vmatpush1.bf16.msra.mxu0 0
  %101 = vmatprep.mubr.bf16.mxu0 0
  %102 = vmatmul.mubr.bf16.gmra.mrb[0].mxu0 %v42
  %v103 = vpop.f32.mrb[0].mxu0
  %v104 = vadd.f32 0.0, %v103
  %v105 = vpop.f32.mrb[0].mxu0
  %v106 = vpop.f32.mrb[0].mxu0
  %v107 = vadd.f32 0.0, %v106
  %v108 = vpop.f32.mrb[0].mxu0
  %109 = vmatprep.mubr.bf16.mxu0 0
  %110 = vmatmul.mubr.bf16.gmra.mrb[0].mxu0 %v45
  %v111 = vpop.f32.mrb[0].mxu0
  %v112 = vadd.f32 0.0, %v111
  %v113 = vpop.f32.mrb[0].mxu0
  %v114 = vpop.f32.mrb[0].mxu0
  %v115 = vadd.f32 0.0, %v114
  %v116 = vpop.f32.mrb[0].mxu0
  %117 = vmatprep.mubr.bf16.mxu0 0
  %118 = vmatmul.mubr.bf16.gmra.mrb[0].mxu0 %v48
  %v119 = vpop.f32.mrb[0].mxu0
  %v120 = vadd.f32 0.0, %v119
  %v121 = vpop.f32.mrb[0].mxu0
  %v122 = vpop.f32.mrb[0].mxu0
  %v123 = vadd.f32 0.0, %v122
  %v124 = vpop.f32.mrb[0].mxu0
  %125 = vmatprep.mubr.bf16.mxu0 0
  %126 = vmatmul.mubr.bf16.gmra.mrb[0].mxu0 %v51
  %v127 = vpop.f32.mrb[0].mxu0
  %v128 = vadd.f32 0.0, %v127
  %v129 = vpop.f32.mrb[0].mxu0
  %v130 = vpop.f32.mrb[0].mxu0
  %v131 = vadd.f32 0.0, %v130
  %v132 = vpop.f32.mrb[0].mxu0
  %133 = vmatprep.mubr.bf16.mxu0 0
  %134 = vmatmul.mubr.bf16.gmra.mrb[0].mxu0 %v54
  %v135 = vpop.f32.mrb[0].mxu0
  %v136 = vadd.f32 0.0, %v135
  %v137 = vpop.f32.mrb[0].mxu0
  %v138 = vpop.f32.mrb[0].mxu0
  %v139 = vadd.f32 0.0, %v138
  %v140 = vpop.f32.mrb[0].mxu0
  %141 = vmatprep.mubr.bf16.mxu0 0
  %142 = vmatmul.mubr.bf16.gmra.mrb[0].mxu0 %v57
  %v143 = vpop.f32.mrb[0].mxu0
  %v144 = vadd.f32 0.0, %v143
  %v145 = vpop.f32.mrb[0].mxu0
  %v146 = vpop.f32.mrb[0].mxu0
  %v147 = vadd.f32 0.0, %v146
  %v148 = vpop.f32.mrb[0].mxu0
  %149 = vmatprep.mubr.bf16.mxu0 0
  %150 = vmatmul.mubr.bf16.gmra.mrb[0].mxu0 %v60
  %v151 = vpop.f32.mrb[0].mxu0
  %v152 = vadd.f32 0.0, %v151
  %v153 = vpop.f32.mrb[0].mxu0
  %v154 = vpop.f32.mrb[0].mxu0
  %v155 = vadd.f32 0.0, %v154
  %v156 = vpop.f32.mrb[0].mxu0
  %157 = vmatprep.mubr.bf16.mxu0 0
  %158 = vmatmul.mubr.bf16.gmra.mrb[0].mxu0 %v63
  %v159 = vpop.f32.mrb[0].mxu0
  %v160 = vadd.f32 0.0, %v159
  %v161 = vpop.f32.mrb[0].mxu0
  %v162 = vpop.f32.mrb[0].mxu0
  %v163 = vadd.f32 0.0, %v162
  %v164 = vpop.f32.mrb[0].mxu0
  %165 = vdwg.mxu0
  %v166 = vpack.c.bf16 %v107, %v104
  %v167 = vpack.c.bf16 %v115, %v112
  %v168 = vpack.c.bf16 %v123, %v120
  %v169 = vpack.c.bf16 %v131, %v128
  %v170 = vpack.c.bf16 %v139, %v136
  %v171 = vpack.c.bf16 %v147, %v144
  %v172 = vpack.c.bf16 %v155, %v152
  %v173 = vpack.c.bf16 %v163, %v160
  %v182 = vunpack.c.l.b16 %v166
  %v183 = vunpack.c.h.b16 %v166
  %v184 = vunpack.c.l.b16 %v167
  %v185 = vunpack.c.h.b16 %v167
  %v186 = vunpack.c.l.b16 %v168
  %v187 = vunpack.c.h.b16 %v168
  %v188 = vunpack.c.l.b16 %v169
  %v189 = vunpack.c.h.b16 %v169
  %v190 = vunpack.c.l.b16 %v170
  %v191 = vunpack.c.h.b16 %v170
  %v192 = vunpack.c.l.b16 %v171
  %v193 = vunpack.c.h.b16 %v171
  %v194 = vunpack.c.l.b16 %v172
  %v195 = vunpack.c.h.b16 %v172
  %v196 = vunpack.c.l.b16 %v173
  %v197 = vunpack.c.h.b16 %v173
  %v198 = vpack.c.b16 %v182, %v182
  %v199 = vpack.c.b16 %v183, %v183
  %v200 = vpack.c.b16 %v184, %v184
  %v201 = vpack.c.b16 %v185, %v185
  %v202 = vpack.c.b16 %v186, %v186
  %v203 = vpack.c.b16 %v187, %v187
  %v204 = vpack.c.b16 %v188, %v188
  %v205 = vpack.c.b16 %v189, %v189
  %v206 = vpack.c.b16 %v190, %v190
  %v207 = vpack.c.b16 %v191, %v191
  %v208 = vpack.c.b16 %v192, %v192
  %v209 = vpack.c.b16 %v193, %v193
  %v210 = vpack.c.b16 %v194, %v194
  %v211 = vpack.c.b16 %v195, %v195
  %v212 = vpack.c.b16 %v196, %v196
  %v213 = vpack.c.b16 %v197, %v197
  %vm230 = vcmask 60416
  %231 = vst.msk [vmem:[%s2] sm:$0xf] %vm230, %v198
  %232 = vst.msk [vmem:[%s2 + $0x4] sm:$0xf] %vm230, %v199
  %233 = vst.msk [vmem:[%s2 + $0x8] sm:$0xf] %vm230, %v200
  %234 = vst.msk [vmem:[%s2 + $0xc] sm:$0xf] %vm230, %v201
  %235 = vst.msk [vmem:[%s2 + $0x10] sm:$0xf] %vm230, %v202
  %236 = vst.msk [vmem:[%s2 + $0x14] sm:$0xf] %vm230, %v203
  %237 = vst.msk [vmem:[%s2 + $0x18] sm:$0xf] %vm230, %v204
  %238 = vst.msk [vmem:[%s2 + $0x1c] sm:$0xf] %vm230, %v205
  %239 = vst.msk [vmem:[%s2 + $0x20] sm:$0xf] %vm230, %v206
  %240 = vst.msk [vmem:[%s2 + $0x24] sm:$0xf] %vm230, %v207
  %241 = vst.msk [vmem:[%s2 + $0x28] sm:$0xf] %vm230, %v208
  %242 = vst.msk [vmem:[%s2 + $0x2c] sm:$0xf] %vm230, %v209
  %243 = vst.msk [vmem:[%s2 + $0x30] sm:$0xf] %vm230, %v210
  %244 = vst.msk [vmem:[%s2 + $0x34] sm:$0xf] %vm230, %v211
  %245 = vst.msk [vmem:[%s2 + $0x38] sm:$0xf] %vm230, %v212
  %246 = vst.msk [vmem:[%s2 + $0x3c] sm:$0xf] %vm230, %v213
  %247 = vrot.lane.b32.xlu0 %v198, 120
  %v248 = vpop.permute.xlu0 %247
  %249 = vrot.lane.b32.xlu0 %v199, 120
  %v250 = vpop.permute.xlu0 %249
  %251 = vrot.lane.b32.xlu0 %v200, 120
  %v252 = vpop.permute.xlu0 %251
  %253 = vrot.lane.b32.xlu0 %v201, 120
  %v254 = vpop.permute.xlu0 %253
  %255 = vrot.lane.b32.xlu0 %v202, 120
  %v256 = vpop.permute.xlu0 %255
  %257 = vrot.lane.b32.xlu0 %v203, 120
  %v258 = vpop.permute.xlu0 %257
  %259 = vrot.lane.b32.xlu0 %v204, 120
  %v260 = vpop.permute.xlu0 %259
  %261 = vrot.lane.b32.xlu0 %v205, 120
  %v262 = vpop.permute.xlu0 %261
  %263 = vrot.lane.b32.xlu0 %v206, 120
  %v264 = vpop.permute.xlu0 %263
  %265 = vrot.lane.b32.xlu0 %v207, 120
  %v266 = vpop.permute.xlu0 %265
  %267 = vrot.lane.b32.xlu0 %v208, 120
  %v268 = vpop.permute.xlu0 %267
  %269 = vrot.lane.b32.xlu0 %v209, 120
  %v270 = vpop.permute.xlu0 %269
  %271 = vrot.lane.b32.xlu0 %v210, 120
  %v272 = vpop.permute.xlu0 %271
  %273 = vrot.lane.b32.xlu0 %v211, 120
  %v274 = vpop.permute.xlu0 %273
  %275 = vrot.lane.b32.xlu0 %v212, 120
  %v276 = vpop.permute.xlu0 %275
  %277 = vrot.lane.b32.xlu0 %v213, 120
  %v278 = vpop.permute.xlu0 %277
  %s295 = scalar_lea.vmem %s2, 64
  %296 = vst.msk [vmem:[%s295] sm:$0xf] %vm230, %v248
  %297 = vst.msk [vmem:[%s295 + $0x4] sm:$0xf] %vm230, %v250
  %298 = vst.msk [vmem:[%s295 + $0x8] sm:$0xf] %vm230, %v252
  %299 = vst.msk [vmem:[%s295 + $0xc] sm:$0xf] %vm230, %v254
  %300 = vst.msk [vmem:[%s295 + $0x10] sm:$0xf] %vm230, %v256
  %301 = vst.msk [vmem:[%s295 + $0x14] sm:$0xf] %vm230, %v258
  %302 = vst.msk [vmem:[%s295 + $0x18] sm:$0xf] %vm230, %v260
  %303 = vst.msk [vmem:[%s295 + $0x1c] sm:$0xf] %vm230, %v262
  %304 = vst.msk [vmem:[%s295 + $0x20] sm:$0xf] %vm230, %v264
  %305 = vst.msk [vmem:[%s295 + $0x24] sm:$0xf] %vm230, %v266
  %306 = vst.msk [vmem:[%s295 + $0x28] sm:$0xf] %vm230, %v268
  %307 = vst.msk [vmem:[%s295 + $0x2c] sm:$0xf] %vm230, %v270
  %308 = vst.msk [vmem:[%s295 + $0x30] sm:$0xf] %vm230, %v272
  %309 = vst.msk [vmem:[%s295 + $0x34] sm:$0xf] %vm230, %v274
  %310 = vst.msk [vmem:[%s295 + $0x38] sm:$0xf] %vm230, %v276
  %311 = vst.msk [vmem:[%s295 + $0x3c] sm:$0xf] %vm230, %v278
  %312 = vrot.lane.b32.xlu0 %v198, 112
  %v313 = vpop.permute.xlu0 %312
  %314 = vrot.lane.b32.xlu0 %v199, 112
  %v315 = vpop.permute.xlu0 %314
  %316 = vrot.lane.b32.xlu0 %v200, 112
  %v317 = vpop.permute.xlu0 %316
  %318 = vrot.lane.b32.xlu0 %v201, 112
  %v319 = vpop.permute.xlu0 %318
  %320 = vrot.lane.b32.xlu0 %v202, 112
  %v321 = vpop.permute.xlu0 %320
  %322 = vrot.lane.b32.xlu0 %v203, 112
  %v323 = vpop.permute.xlu0 %322
  %324 = vrot.lane.b32.xlu0 %v204, 112
  %v325 = vpop.permute.xlu0 %324
  %326 = vrot.lane.b32.xlu0 %v205, 112
  %v327 = vpop.permute.xlu0 %326
  %328 = vrot.lane.b32.xlu0 %v206, 112
  %v329 = vpop.permute.xlu0 %328
  %330 = vrot.lane.b32.xlu0 %v207, 112
  %v331 = vpop.permute.xlu0 %330
  %332 = vrot.lane.b32.xlu0 %v208, 112
  %v333 = vpop.permute.xlu0 %332
  %334 = vrot.lane.b32.xlu0 %v209, 112
  %v335 = vpop.permute.xlu0 %334
  %336 = vrot.lane.b32.xlu0 %v210, 112
  %v337 = vpop.permute.xlu0 %336
  %338 = vrot.lane.b32.xlu0 %v211, 112
  %v339 = vpop.permute.xlu0 %338
  %340 = vrot.lane.b32.xlu0 %v212, 112
  %v341 = vpop.permute.xlu0 %340
  %342 = vrot.lane.b32.xlu0 %v213, 112
  %v343 = vpop.permute.xlu0 %342
  %s360 = scalar_lea.vmem %s2, 128
  %361 = vst.msk [vmem:[%s360] sm:$0xf] %vm230, %v313
  %362 = vst.msk [vmem:[%s360 + $0x4] sm:$0xf] %vm230, %v315
  %363 = vst.msk [vmem:[%s360 + $0x8] sm:$0xf] %vm230, %v317
  %364 = vst.msk [vmem:[%s360 + $0xc] sm:$0xf] %vm230, %v319
  %365 = vst.msk [vmem:[%s360 + $0x10] sm:$0xf] %vm230, %v321
  %366 = vst.msk [vmem:[%s360 + $0x14] sm:$0xf] %vm230, %v323
  %367 = vst.msk [vmem:[%s360 + $0x18] sm:$0xf] %vm230, %v325
  %368 = vst.msk [vmem:[%s360 + $0x1c] sm:$0xf] %vm230, %v327
  %369 = vst.msk [vmem:[%s360 + $0x20] sm:$0xf] %vm230, %v329
  %370 = vst.msk [vmem:[%s360 + $0x24] sm:$0xf] %vm230, %v331
  %371 = vst.msk [vmem:[%s360 + $0x28] sm:$0xf] %vm230, %v333
  %372 = vst.msk [vmem:[%s360 + $0x2c] sm:$0xf] %vm230, %v335
  %373 = vst.msk [vmem:[%s360 + $0x30] sm:$0xf] %vm230, %v337
  %374 = vst.msk [vmem:[%s360 + $0x34] sm:$0xf] %vm230, %v339
  %375 = vst.msk [vmem:[%s360 + $0x38] sm:$0xf] %vm230, %v341
  %376 = vst.msk [vmem:[%s360 + $0x3c] sm:$0xf] %vm230, %v343
  %377 = vrot.lane.b32.xlu0 %v198, 104
  %v378 = vpop.permute.xlu0 %377
  %379 = vrot.lane.b32.xlu0 %v199, 104
  %v380 = vpop.permute.xlu0 %379
  %381 = vrot.lane.b32.xlu0 %v200, 104
  %v382 = vpop.permute.xlu0 %381
  %383 = vrot.lane.b32.xlu0 %v201, 104
  %v384 = vpop.permute.xlu0 %383
  %385 = vrot.lane.b32.xlu0 %v202, 104
  %v386 = vpop.permute.xlu0 %385
  %387 = vrot.lane.b32.xlu0 %v203, 104
  %v388 = vpop.permute.xlu0 %387
  %389 = vrot.lane.b32.xlu0 %v204, 104
  %v390 = vpop.permute.xlu0 %389
  %391 = vrot.lane.b32.xlu0 %v205, 104
  %v392 = vpop.permute.xlu0 %391
  %393 = vrot.lane.b32.xlu0 %v206, 104
  %v394 = vpop.permute.xlu0 %393
  %395 = vrot.lane.b32.xlu0 %v207, 104
  %v396 = vpop.permute.xlu0 %395
  %397 = vrot.lane.b32.xlu0 %v208, 104
  %v398 = vpop.permute.xlu0 %397
  %399 = vrot.lane.b32.xlu0 %v209, 104
  %v400 = vpop.permute.xlu0 %399
  %401 = vrot.lane.b32.xlu0 %v210, 104
  %v402 = vpop.permute.xlu0 %401
  %403 = vrot.lane.b32.xlu0 %v211, 104
  %v404 = vpop.permute.xlu0 %403
  %405 = vrot.lane.b32.xlu0 %v212, 104
  %v406 = vpop.permute.xlu0 %405
  %407 = vrot.lane.b32.xlu0 %v213, 104
  %v408 = vpop.permute.xlu0 %407
  %s425 = scalar_lea.vmem %s2, 192
  %426 = vst.msk [vmem:[%s425] sm:$0xf] %vm230, %v378
  %427 = vst.msk [vmem:[%s425 + $0x4] sm:$0xf] %vm230, %v380
  %428 = vst.msk [vmem:[%s425 + $0x8] sm:$0xf] %vm230, %v382
  %429 = vst.msk [vmem:[%s425 + $0xc] sm:$0xf] %vm230, %v384
  %430 = vst.msk [vmem:[%s425 + $0x10] sm:$0xf] %vm230, %v386
  %431 = vst.msk [vmem:[%s425 + $0x14] sm:$0xf] %vm230, %v388
  %432 = vst.msk [vmem:[%s425 + $0x18] sm:$0xf] %vm230, %v390
  %433 = vst.msk [vmem:[%s425 + $0x1c] sm:$0xf] %vm230, %v392
  %434 = vst.msk [vmem:[%s425 + $0x20] sm:$0xf] %vm230, %v394
  %435 = vst.msk [vmem:[%s425 + $0x24] sm:$0xf] %vm230, %v396
  %436 = vst.msk [vmem:[%s425 + $0x28] sm:$0xf] %vm230, %v398
  %437 = vst.msk [vmem:[%s425 + $0x2c] sm:$0xf] %vm230, %v400
  %438 = vst.msk [vmem:[%s425 + $0x30] sm:$0xf] %vm230, %v402
  %439 = vst.msk [vmem:[%s425 + $0x34] sm:$0xf] %vm230, %v404
  %440 = vst.msk [vmem:[%s425 + $0x38] sm:$0xf] %vm230, %v406
  %441 = vst.msk [vmem:[%s425 + $0x3c] sm:$0xf] %vm230, %v408
  %442 = vrot.lane.b32.xlu0 %v198, 96
  %v443 = vpop.permute.xlu0 %442
  %444 = vrot.lane.b32.xlu0 %v199, 96
  %v445 = vpop.permute.xlu0 %444
  %446 = vrot.lane.b32.xlu0 %v200, 96
  %v447 = vpop.permute.xlu0 %446
  %448 = vrot.lane.b32.xlu0 %v201, 96
  %v449 = vpop.permute.xlu0 %448
  %450 = vrot.lane.b32.xlu0 %v202, 96
  %v451 = vpop.permute.xlu0 %450
  %452 = vrot.lane.b32.xlu0 %v203, 96
  %v453 = vpop.permute.xlu0 %452
  %454 = vrot.lane.b32.xlu0 %v204, 96
  %v455 = vpop.permute.xlu0 %454
  %456 = vrot.lane.b32.xlu0 %v205, 96
  %v457 = vpop.permute.xlu0 %456
  %458 = vrot.lane.b32.xlu0 %v206, 96
  %v459 = vpop.permute.xlu0 %458
  %460 = vrot.lane.b32.xlu0 %v207, 96
  %v461 = vpop.permute.xlu0 %460
  %462 = vrot.lane.b32.xlu0 %v208, 96
  %v463 = vpop.permute.xlu0 %462
  %464 = vrot.lane.b32.xlu0 %v209, 96
  %v465 = vpop.permute.xlu0 %464
  %466 = vrot.lane.b32.xlu0 %v210, 96
  %v467 = vpop.permute.xlu0 %466
  %468 = vrot.lane.b32.xlu0 %v211, 96
  %v469 = vpop.permute.xlu0 %468
  %470 = vrot.lane.b32.xlu0 %v212, 96
  %v471 = vpop.permute.xlu0 %470
  %472 = vrot.lane.b32.xlu0 %v213, 96
  %v473 = vpop.permute.xlu0 %472
  %s490 = scalar_lea.vmem %s2, 256
  %491 = vst.msk [vmem:[%s490] sm:$0xf] %vm230, %v443
  %492 = vst.msk [vmem:[%s490 + $0x4] sm:$0xf] %vm230, %v445
  %493 = vst.msk [vmem:[%s490 + $0x8] sm:$0xf] %vm230, %v447
  %494 = vst.msk [vmem:[%s490 + $0xc] sm:$0xf] %vm230, %v449
  %495 = vst.msk [vmem:[%s490 + $0x10] sm:$0xf] %vm230, %v451
  %496 = vst.msk [vmem:[%s490 + $0x14] sm:$0xf] %vm230, %v453
  %497 = vst.msk [vmem:[%s490 + $0x18] sm:$0xf] %vm230, %v455
  %498 = vst.msk [vmem:[%s490 + $0x1c] sm:$0xf] %vm230, %v457
  %499 = vst.msk [vmem:[%s490 + $0x20] sm:$0xf] %vm230, %v459
  %500 = vst.msk [vmem:[%s490 + $0x24] sm:$0xf] %vm230, %v461
  %501 = vst.msk [vmem:[%s490 + $0x28] sm:$0xf] %vm230, %v463
  %502 = vst.msk [vmem:[%s490 + $0x2c] sm:$0xf] %vm230, %v465
  %503 = vst.msk [vmem:[%s490 + $0x30] sm:$0xf] %vm230, %v467
  %504 = vst.msk [vmem:[%s490 + $0x34] sm:$0xf] %vm230, %v469
  %505 = vst.msk [vmem:[%s490 + $0x38] sm:$0xf] %vm230, %v471
  %506 = vst.msk [vmem:[%s490 + $0x3c] sm:$0xf] %vm230, %v473
  %507 = vrot.lane.b32.xlu0 %v198, 88
  %v508 = vpop.permute.xlu0 %507
  %509 = vrot.lane.b32.xlu0 %v199, 88
  %v510 = vpop.permute.xlu0 %509
  %511 = vrot.lane.b32.xlu0 %v200, 88
  %v512 = vpop.permute.xlu0 %511
  %513 = vrot.lane.b32.xlu0 %v201, 88
  %v514 = vpop.permute.xlu0 %513
  %515 = vrot.lane.b32.xlu0 %v202, 88
  %v516 = vpop.permute.xlu0 %515
  %517 = vrot.lane.b32.xlu0 %v203, 88
  %v518 = vpop.permute.xlu0 %517
  %519 = vrot.lane.b32.xlu0 %v204, 88
  %v520 = vpop.permute.xlu0 %519
  %521 = vrot.lane.b32.xlu0 %v205, 88
  %v522 = vpop.permute.xlu0 %521
  %523 = vrot.lane.b32.xlu0 %v206, 88
  %v524 = vpop.permute.xlu0 %523
  %525 = vrot.lane.b32.xlu0 %v207, 88
  %v526 = vpop.permute.xlu0 %525
  %527 = vrot.lane.b32.xlu0 %v208, 88
  %v528 = vpop.permute.xlu0 %527
  %529 = vrot.lane.b32.xlu0 %v209, 88
  %v530 = vpop.permute.xlu0 %529
  %531 = vrot.lane.b32.xlu0 %v210, 88
  %v532 = vpop.permute.xlu0 %531
  %533 = vrot.lane.b32.xlu0 %v211, 88
  %v534 = vpop.permute.xlu0 %533
  %535 = vrot.lane.b32.xlu0 %v212, 88
  %v536 = vpop.permute.xlu0 %535
  %537 = vrot.lane.b32.xlu0 %v213, 88
  %v538 = vpop.permute.xlu0 %537
  %s555 = scalar_lea.vmem %s2, 320
  %556 = vst.msk [vmem:[%s555] sm:$0xf] %vm230, %v508
  %557 = vst.msk [vmem:[%s555 + $0x4] sm:$0xf] %vm230, %v510
  %558 = vst.msk [vmem:[%s555 + $0x8] sm:$0xf] %vm230, %v512
  %559 = vst.msk [vmem:[%s555 + $0xc] sm:$0xf] %vm230, %v514
  %560 = vst.msk [vmem:[%s555 + $0x10] sm:$0xf] %vm230, %v516
  %561 = vst.msk [vmem:[%s555 + $0x14] sm:$0xf] %vm230, %v518
  %562 = vst.msk [vmem:[%s555 + $0x18] sm:$0xf] %vm230, %v520
  %563 = vst.msk [vmem:[%s555 + $0x1c] sm:$0xf] %vm230, %v522
  %564 = vst.msk [vmem:[%s555 + $0x20] sm:$0xf] %vm230, %v524
  %565 = vst.msk [vmem:[%s555 + $0x24] sm:$0xf] %vm230, %v526
  %566 = vst.msk [vmem:[%s555 + $0x28] sm:$0xf] %vm230, %v528
  %567 = vst.msk [vmem:[%s555 + $0x2c] sm:$0xf] %vm230, %v530
  %568 = vst.msk [vmem:[%s555 + $0x30] sm:$0xf] %vm230, %v532
  %569 = vst.msk [vmem:[%s555 + $0x34] sm:$0xf] %vm230, %v534
  %570 = vst.msk [vmem:[%s555 + $0x38] sm:$0xf] %vm230, %v536
  %571 = vst.msk [vmem:[%s555 + $0x3c] sm:$0xf] %vm230, %v538
  %572 = vrot.lane.b32.xlu0 %v198, 80
  %v573 = vpop.permute.xlu0 %572
  %574 = vrot.lane.b32.xlu0 %v199, 80
  %v575 = vpop.permute.xlu0 %574
  %576 = vrot.lane.b32.xlu0 %v200, 80
  %v577 = vpop.permute.xlu0 %576
  %578 = vrot.lane.b32.xlu0 %v201, 80
  %v579 = vpop.permute.xlu0 %578
  %580 = vrot.lane.b32.xlu0 %v202, 80
  %v581 = vpop.permute.xlu0 %580
  %582 = vrot.lane.b32.xlu0 %v203, 80
  %v583 = vpop.permute.xlu0 %582
  %584 = vrot.lane.b32.xlu0 %v204, 80
  %v585 = vpop.permute.xlu0 %584
  %586 = vrot.lane.b32.xlu0 %v205, 80
  %v587 = vpop.permute.xlu0 %586
  %588 = vrot.lane.b32.xlu0 %v206, 80
  %v589 = vpop.permute.xlu0 %588
  %590 = vrot.lane.b32.xlu0 %v207, 80
  %v591 = vpop.permute.xlu0 %590
  %592 = vrot.lane.b32.xlu0 %v208, 80
  %v593 = vpop.permute.xlu0 %592
  %594 = vrot.lane.b32.xlu0 %v209, 80
  %v595 = vpop.permute.xlu0 %594
  %596 = vrot.lane.b32.xlu0 %v210, 80
  %v597 = vpop.permute.xlu0 %596
  %598 = vrot.lane.b32.xlu0 %v211, 80
  %v599 = vpop.permute.xlu0 %598
  %600 = vrot.lane.b32.xlu0 %v212, 80
  %v601 = vpop.permute.xlu0 %600
  %602 = vrot.lane.b32.xlu0 %v213, 80
  %v603 = vpop.permute.xlu0 %602
  %s620 = scalar_lea.vmem %s2, 384
  %621 = vst.msk [vmem:[%s620] sm:$0xf] %vm230, %v573
  %622 = vst.msk [vmem:[%s620 + $0x4] sm:$0xf] %vm230, %v575
  %623 = vst.msk [vmem:[%s620 + $0x8] sm:$0xf] %vm230, %v577
  %624 = vst.msk [vmem:[%s620 + $0xc] sm:$0xf] %vm230, %v579
  %625 = vst.msk [vmem:[%s620 + $0x10] sm:$0xf] %vm230, %v581
  %626 = vst.msk [vmem:[%s620 + $0x14] sm:$0xf] %vm230, %v583
  %627 = vst.msk [vmem:[%s620 + $0x18] sm:$0xf] %vm230, %v585
  %628 = vst.msk [vmem:[%s620 + $0x1c] sm:$0xf] %vm230, %v587
  %629 = vst.msk [vmem:[%s620 + $0x20] sm:$0xf] %vm230, %v589
  %630 = vst.msk [vmem:[%s620 + $0x24] sm:$0xf] %vm230, %v591
  %631 = vst.msk [vmem:[%s620 + $0x28] sm:$0xf] %vm230, %v593
  %632 = vst.msk [vmem:[%s620 + $0x2c] sm:$0xf] %vm230, %v595
  %633 = vst.msk [vmem:[%s620 + $0x30] sm:$0xf] %vm230, %v597
  %634 = vst.msk [vmem:[%s620 + $0x34] sm:$0xf] %vm230, %v599
  %635 = vst.msk [vmem:[%s620 + $0x38] sm:$0xf] %vm230, %v601
  %636 = vst.msk [vmem:[%s620 + $0x3c] sm:$0xf] %vm230, %v603
  %637 = vrot.lane.b32.xlu0 %v198, 72
  %v638 = vpop.permute.xlu0 %637
  %639 = vrot.lane.b32.xlu0 %v199, 72
  %v640 = vpop.permute.xlu0 %639
  %641 = vrot.lane.b32.xlu0 %v200, 72
  %v642 = vpop.permute.xlu0 %641
  %643 = vrot.lane.b32.xlu0 %v201, 72
  %v644 = vpop.permute.xlu0 %643
  %645 = vrot.lane.b32.xlu0 %v202, 72
  %v646 = vpop.permute.xlu0 %645
  %647 = vrot.lane.b32.xlu0 %v203, 72
  %v648 = vpop.permute.xlu0 %647
  %649 = vrot.lane.b32.xlu0 %v204, 72
  %v650 = vpop.permute.xlu0 %649
  %651 = vrot.lane.b32.xlu0 %v205, 72
  %v652 = vpop.permute.xlu0 %651
  %653 = vrot.lane.b32.xlu0 %v206, 72
  %v654 = vpop.permute.xlu0 %653
  %655 = vrot.lane.b32.xlu0 %v207, 72
  %v656 = vpop.permute.xlu0 %655
  %657 = vrot.lane.b32.xlu0 %v208, 72
  %v658 = vpop.permute.xlu0 %657
  %659 = vrot.lane.b32.xlu0 %v209, 72
  %v660 = vpop.permute.xlu0 %659
  %661 = vrot.lane.b32.xlu0 %v210, 72
  %v662 = vpop.permute.xlu0 %661
  %663 = vrot.lane.b32.xlu0 %v211, 72
  %v664 = vpop.permute.xlu0 %663
  %665 = vrot.lane.b32.xlu0 %v212, 72
  %v666 = vpop.permute.xlu0 %665
  %667 = vrot.lane.b32.xlu0 %v213, 72
  %v668 = vpop.permute.xlu0 %667
  %s685 = scalar_lea.vmem %s2, 448
  %686 = vst.msk [vmem:[%s685] sm:$0xf] %vm230, %v638
  %687 = vst.msk [vmem:[%s685 + $0x4] sm:$0xf] %vm230, %v640
  %688 = vst.msk [vmem:[%s685 + $0x8] sm:$0xf] %vm230, %v642
  %689 = vst.msk [vmem:[%s685 + $0xc] sm:$0xf] %vm230, %v644
  %690 = vst.msk [vmem:[%s685 + $0x10] sm:$0xf] %vm230, %v646
  %691 = vst.msk [vmem:[%s685 + $0x14] sm:$0xf] %vm230, %v648
  %692 = vst.msk [vmem:[%s685 + $0x18] sm:$0xf] %vm230, %v650
  %693 = vst.msk [vmem:[%s685 + $0x1c] sm:$0xf] %vm230, %v652
  %694 = vst.msk [vmem:[%s685 + $0x20] sm:$0xf] %vm230, %v654
  %695 = vst.msk [vmem:[%s685 + $0x24] sm:$0xf] %vm230, %v656
  %696 = vst.msk [vmem:[%s685 + $0x28] sm:$0xf] %vm230, %v658
  %697 = vst.msk [vmem:[%s685 + $0x2c] sm:$0xf] %vm230, %v660
  %698 = vst.msk [vmem:[%s685 + $0x30] sm:$0xf] %vm230, %v662
  %699 = vst.msk [vmem:[%s685 + $0x34] sm:$0xf] %vm230, %v664
  %700 = vst.msk [vmem:[%s685 + $0x38] sm:$0xf] %vm230, %v666
  %701 = vst.msk [vmem:[%s685 + $0x3c] sm:$0xf] %vm230, %v668
  %718 = vrot.lane.b32.xlu0 %v104, 64
  %v719 = vpop.permute.xlu0 %718
  %720 = vrot.lane.b32.xlu0 %v107, 64
  %v721 = vpop.permute.xlu0 %720
  %722 = vrot.lane.b32.xlu0 %v112, 64
  %v723 = vpop.permute.xlu0 %722
  %724 = vrot.lane.b32.xlu0 %v115, 64
  %v725 = vpop.permute.xlu0 %724
  %726 = vrot.lane.b32.xlu0 %v120, 64
  %v727 = vpop.permute.xlu0 %726
  %728 = vrot.lane.b32.xlu0 %v123, 64
  %v729 = vpop.permute.xlu0 %728
  %730 = vrot.lane.b32.xlu0 %v128, 64
  %v731 = vpop.permute.xlu0 %730
  %732 = vrot.lane.b32.xlu0 %v131, 64
  %v733 = vpop.permute.xlu0 %732
  %734 = vrot.lane.b32.xlu0 %v136, 64
  %v735 = vpop.permute.xlu0 %734
  %736 = vrot.lane.b32.xlu0 %v139, 64
  %v737 = vpop.permute.xlu0 %736
  %738 = vrot.lane.b32.xlu0 %v144, 64
  %v739 = vpop.permute.xlu0 %738
  %740 = vrot.lane.b32.xlu0 %v147, 64
  %v741 = vpop.permute.xlu0 %740
  %742 = vrot.lane.b32.xlu0 %v152, 64
  %v743 = vpop.permute.xlu0 %742
  %744 = vrot.lane.b32.xlu0 %v155, 64
  %v745 = vpop.permute.xlu0 %744
  %746 = vrot.lane.b32.xlu0 %v160, 64
  %v747 = vpop.permute.xlu0 %746
  %748 = vrot.lane.b32.xlu0 %v163, 64
  %v749 = vpop.permute.xlu0 %748
  %766 = vst.msk [vmem:[%s3] sm:$0xff] %vm40, %v719
  %767 = vst.msk [vmem:[%s3 + $0x8] sm:$0xff] %vm40, %v721
  %768 = vst.msk [vmem:[%s3 + $0x10] sm:$0xff] %vm40, %v723
  %769 = vst.msk [vmem:[%s3 + $0x18] sm:$0xff] %vm40, %v725
  %770 = vst.msk [vmem:[%s3 + $0x20] sm:$0xff] %vm40, %v727
  %771 = vst.msk [vmem:[%s3 + $0x28] sm:$0xff] %vm40, %v729
  %772 = vst.msk [vmem:[%s3 + $0x30] sm:$0xff] %vm40, %v731
  %773 = vst.msk [vmem:[%s3 + $0x38] sm:$0xff] %vm40, %v733
  %774 = vst.msk [vmem:[%s3 + $0x40] sm:$0xff] %vm40, %v735
  %775 = vst.msk [vmem:[%s3 + $0x48] sm:$0xff] %vm40, %v737
  %776 = vst.msk [vmem:[%s3 + $0x50] sm:$0xff] %vm40, %v739
  %777 = vst.msk [vmem:[%s3 + $0x58] sm:$0xff] %vm40, %v741
  %778 = vst.msk [vmem:[%s3 + $0x60] sm:$0xff] %vm40, %v743
  %779 = vst.msk [vmem:[%s3 + $0x68] sm:$0xff] %vm40, %v745
  %780 = vst.msk [vmem:[%s3 + $0x70] sm:$0xff] %vm40, %v747
  %781 = vst.msk [vmem:[%s3 + $0x78] sm:$0xff] %vm40, %v749
  %782 = vrot.lane.b32.xlu0 %v104, 56
  %v783 = vpop.permute.xlu0 %782
  %784 = vrot.lane.b32.xlu0 %v107, 56
  %v785 = vpop.permute.xlu0 %784
  %786 = vrot.lane.b32.xlu0 %v112, 56
  %v787 = vpop.permute.xlu0 %786
  %788 = vrot.lane.b32.xlu0 %v115, 56
  %v789 = vpop.permute.xlu0 %788
  %790 = vrot.lane.b32.xlu0 %v120, 56
  %v791 = vpop.permute.xlu0 %790
  %792 = vrot.lane.b32.xlu0 %v123, 56
  %v793 = vpop.permute.xlu0 %792
  %794 = vrot.lane.b32.xlu0 %v128, 56
  %v795 = vpop.permute.xlu0 %794
  %796 = vrot.lane.b32.xlu0 %v131, 56
  %v797 = vpop.permute.xlu0 %796
  %798 = vrot.lane.b32.xlu0 %v136, 56
  %v799 = vpop.permute.xlu0 %798
  %800 = vrot.lane.b32.xlu0 %v139, 56
  %v801 = vpop.permute.xlu0 %800
  %802 = vrot.lane.b32.xlu0 %v144, 56
  %v803 = vpop.permute.xlu0 %802
  %804 = vrot.lane.b32.xlu0 %v147, 56
  %v805 = vpop.permute.xlu0 %804
  %806 = vrot.lane.b32.xlu0 %v152, 56
  %v807 = vpop.permute.xlu0 %806
  %808 = vrot.lane.b32.xlu0 %v155, 56
  %v809 = vpop.permute.xlu0 %808
  %810 = vrot.lane.b32.xlu0 %v160, 56
  %v811 = vpop.permute.xlu0 %810
  %812 = vrot.lane.b32.xlu0 %v163, 56
  %v813 = vpop.permute.xlu0 %812
  %830 = vst.msk [vmem:[%s4] sm:$0xff] %vm40, %v783
  %831 = vst.msk [vmem:[%s4 + $0x8] sm:$0xff] %vm40, %v785
  %832 = vst.msk [vmem:[%s4 + $0x10] sm:$0xff] %vm40, %v787
  %833 = vst.msk [vmem:[%s4 + $0x18] sm:$0xff] %vm40, %v789
  %834 = vst.msk [vmem:[%s4 + $0x20] sm:$0xff] %vm40, %v791
  %835 = vst.msk [vmem:[%s4 + $0x28] sm:$0xff] %vm40, %v793
  %836 = vst.msk [vmem:[%s4 + $0x30] sm:$0xff] %vm40, %v795
  %837 = vst.msk [vmem:[%s4 + $0x38] sm:$0xff] %vm40, %v797
  %838 = vst.msk [vmem:[%s4 + $0x40] sm:$0xff] %vm40, %v799
  %839 = vst.msk [vmem:[%s4 + $0x48] sm:$0xff] %vm40, %v801
  %840 = vst.msk [vmem:[%s4 + $0x50] sm:$0xff] %vm40, %v803
  %841 = vst.msk [vmem:[%s4 + $0x58] sm:$0xff] %vm40, %v805
  %842 = vst.msk [vmem:[%s4 + $0x60] sm:$0xff] %vm40, %v807
  %843 = vst.msk [vmem:[%s4 + $0x68] sm:$0xff] %vm40, %v809
  %844 = vst.msk [vmem:[%s4 + $0x70] sm:$0xff] %vm40, %v811
  %845 = vst.msk [vmem:[%s4 + $0x78] sm:$0xff] %vm40, %v813
  // Predicated region
  $region10: #{tpu_custom_call.1} parent=0 // pred_check
    _
  $region11: #{tpu_custom_call.1} parent=0 // pred_check_branch
    %847 = sbr.rel (0) target = $region13
  $region12: #{tpu_custom_call.1} parent=0 // pred_region
    _
  $region13: #{tpu_custom_call.1} parent=0 // pred_fallthru
    _
  // Predicated region
  $region14: #{tpu_custom_call.1} parent=0 // pred_check
    _
  $region15: #{tpu_custom_call.1} parent=0 // pred_check_branch
    %849 = sbr.rel (0) target = $region17
  $region16: #{tpu_custom_call.1} parent=0 // pred_region
    _
  $region17: #{tpu_custom_call.1} parent=0 // pred_fallthru
    _
  // Predicated region
  $region18: #{tpu_custom_call.1} parent=0 // pred_check
    _
  $region19: #{tpu_custom_call.1} parent=0 // pred_check_branch
    %851 = sbr.rel (0) target = $region21
  $region20: #{tpu_custom_call.1} parent=0 // pred_region
    _
  $region21: #{tpu_custom_call.1} parent=0 // pred_fallthru
    _
  // Predicated region
  $region22: #{tpu_custom_call.1} parent=0 // pred_check
    _
  $region23: #{tpu_custom_call.1} parent=0 // pred_check_branch
    %853 = sbr.rel (0) target = $region25
  $region24: #{tpu_custom_call.1} parent=0 // pred_region
    _
  $region25: #{tpu_custom_call.1} parent=0 // pred_fallthru
    _
  // Predicated region
  $region26: #{tpu_custom_call.1} parent=0 // pred_check
    _
  $region27: #{tpu_custom_call.1} parent=0 // pred_check_branch
    %855 = sbr.rel (0) target = $region29
  $region28: #{tpu_custom_call.1} parent=0 // pred_region
    _
  $region29: #{tpu_custom_call.1} parent=0 // pred_fallthru
    _
  // Predicated region
  $region30: #{tpu_custom_call.1} parent=0 // pred_check
    _
  $region31: #{tpu_custom_call.1} parent=0 // pred_check_branch
    %857 = sbr.rel (0) target = $region33
  $region32: #{tpu_custom_call.1} parent=0 // pred_region
    _
  $region33: #{tpu_custom_call.1} parent=0 // pred_fallthru
    _

</llo_original>
